<compile_context>
chip_gen: v7x
topology: tpu7x:2x2x1
jax: 0.10.0
libtpu: 0.0.40
codegen_flags: <defaults>
</compile_context>

<pallas_src>
import functools
from typing import NamedTuple

import jax
import jax.numpy as jnp
from jax import lax
from jax.experimental import pallas as pl
from jax.experimental.pallas import tpu as pltpu

_HID = 128      # hidden width, zero-padded 64 -> 128 (full MXU / lane width)
_LOGITS = 2     # real output width (written exactly; no padded output slab)


def _round_up(a, m):
    return ((a + m - 1) // m) * m


def _cdiv(a, b):
    return -(-a // b)


def _pick_tk(K):
    # Feature-dim tile: one lane-aligned chunk for small K, 512 otherwise.
    return 512 if K > 512 else _round_up(max(K, 1), 128)


def _pick_tm(B, tk):
    """Largest batch tile whose VMEM footprint (x/out double buffers, weight
    double buffers, f32 accumulator) fits a conservative 32 MiB budget (safe on
    v7x's 64 MiB physical VMEM; trivially fine on v5e/v6e's 128 MiB)."""
    budget = 32 * 1024 * 1024
    fixed = (2 * tk * _HID * 2              # w1 block, double-buffered, bf16
             + 2 * 2 * _HID * _HID * 2      # w2, w3, double-buffered, bf16
             + 2 * _HID * _LOGITS * 2)      # w4, double-buffered, bf16
    per_row = (2 * tk * 4                   # x block, double-buffered, f32
               + _HID * 4                   # f32 accumulator scratch
               + 2 * _LOGITS * 4)           # out block, double-buffered, f32
    tm = (budget - fixed) // per_row
    tm = max(8, min(1024, (tm // 8) * 8))
    tm = min(tm, _round_up(B, 8))
    # Guarantee >= 2 batch grid steps for large batches so the "parallel" axis
    # can shard across v7x's two TensorCores.
    if B >= 512:
        tm = min(tm, max(256, _round_up(_cdiv(B, 2), 8)))
    return tm


class HindroidParams(NamedTuple):
    w1p: jax.Array   # (k_pad, 128) bf16
    w2p: jax.Array   # (128, 128)   bf16
    w3p: jax.Array   # (128, 128)   bf16
    w4p: jax.Array   # (128, 2)     bf16
    n_features: int
    tk: int


def prepare_hindroid_params(w1, w2, w3, w4):
    """Hoisted, once-per-model weight prep: zero-pad to lane-aligned shapes and
    cast to bf16.  Zero padding is exact through the bias-free layers + ReLU."""
    K = w1.shape[0]
    tk = _pick_tk(K)
    k_pad = _round_up(K, tk)
    bf = jnp.bfloat16
    w1p = jnp.zeros((k_pad, _HID), bf).at[:K, :64].set(w1.astype(bf))
    w2p = jnp.zeros((_HID, _HID), bf).at[:64, :64].set(w2.astype(bf))
    w3p = jnp.zeros((_HID, _HID), bf).at[:64, :64].set(w3.astype(bf))
    w4p = jnp.zeros((_HID, _LOGITS), bf).at[:64, :].set(w4.astype(bf))
    return HindroidParams(w1p, w2p, w3p, w4p, K, tk)


def _mlp_kernel(x_ref, w1_ref, w2_ref, w3_ref, w4_ref, o_ref, acc_ref,
                *, n_features, tk, mask_k):
    k = pl.program_id(1)

    @pl.when(k == 0)
    def _init():
        acc_ref[...] = jnp.zeros_like(acc_ref)

    x = x_ref[...]                                  # (tm, tk) f32, raw from HBM
    if mask_k:                                      # zero K-padding columns
        col = lax.broadcasted_iota(jnp.int32, x.shape, 1) + k * tk
        x = jnp.where(col < n_features, x, 0.0)
    xb = x.astype(jnp.bfloat16)                     # VPU cast; MXU does bf16 x bf16 -> f32
    acc_ref[...] += jnp.dot(xb, w1_ref[...], preferred_element_type=jnp.float32)

    @pl.when(k == pl.num_programs(1) - 1)
    def _finish():
        h = jnp.maximum(acc_ref[...], 0.0).astype(jnp.bfloat16)
        h = jnp.dot(h, w2_ref[...], preferred_element_type=jnp.float32)
        h = jnp.maximum(h, 0.0).astype(jnp.bfloat16)
        h = jnp.dot(h, w3_ref[...], preferred_element_type=jnp.float32)
        h = jnp.maximum(h, 0.0).astype(jnp.bfloat16)
        out = jnp.dot(h, w4_ref[...], preferred_element_type=jnp.float32)
        o_ref[...] = out.astype(o_ref.dtype)


def hindroid_substitute_apply(x, params, *, tm=None):
    """x: (B, ...) f32 — flattened to (B, n_features) like x.view(B, -1).
    Returns (B, 2) f32 logits."""
    B = x.shape[0]
    x2d = x.reshape(B, -1)
    K = x2d.shape[1]
    assert K == params.n_features, "feature count mismatch with prepared params"

    tk = params.tk
    k_pad = params.w1p.shape[0]
    n_k = k_pad // tk
    if tm is None:
        tm = _pick_tm(B, tk)
    tm = max(8, _round_up(tm, 8))
    n_b = _cdiv(B, tm)

    kernel = functools.partial(
        _mlp_kernel, n_features=K, tk=tk, mask_k=(K % tk != 0))

    flops = 2 * B * (k_pad * _HID + 2 * _HID * _HID + _HID * _LOGITS)
    bytes_accessed = (
        x2d.size * 4
        + n_b * (params.w1p.size + params.w2p.size
                 + params.w3p.size + params.w4p.size) * 2
        + B * _LOGITS * 4)

    return pl.pallas_call(
        kernel,
        out_shape=jax.ShapeDtypeStruct((B, _LOGITS), jnp.float32),
        grid_spec=pltpu.PrefetchScalarGridSpec(
            num_scalar_prefetch=0,
            grid=(n_b, n_k),
            in_specs=[
                pl.BlockSpec((tm, tk), lambda i, k: (i, k)),        # x (f32, raw)
                pl.BlockSpec((tk, _HID), lambda i, k: (k, 0)),      # w1 (K-blocked)
                pl.BlockSpec((_HID, _HID), lambda i, k: (0, 0)),    # w2 (resident)
                pl.BlockSpec((_HID, _HID), lambda i, k: (0, 0)),    # w3 (resident)
                pl.BlockSpec((_HID, _LOGITS), lambda i, k: (0, 0)), # w4 (resident)
            ],
            out_specs=pl.BlockSpec((tm, _LOGITS), lambda i, k: (i, 0)),
            scratch_shapes=[pltpu.VMEM((tm, _HID), jnp.float32)],
        ),
        compiler_params=pltpu.CompilerParams(
            dimension_semantics=("parallel", "arbitrary"),
            vmem_limit_bytes=48 * 1024 * 1024,
        ),
        cost_estimate=pl.CostEstimate(
            flops=flops, transcendentals=0, bytes_accessed=bytes_accessed),
    )(x2d, params.w1p, params.w2p, params.w3p, params.w4p)


def hindroid_substitute_forward(x, w1, w2, w3, w4, *, tm=None):
    """Convenience one-shot wrapper (weight prep NOT hoisted)."""
    return hindroid_substitute_apply(x, prepare_hindroid_params(w1, w2, w3, w4), tm=tm)


def _init_params(key, n_features):
    # Deterministic synthetic weights (Kaiming-uniform-ish per layer),
    # stored already transposed as (in_dim, out_dim), f32.
    k1, k2, k3, k4 = jax.random.split(key, 4)

    def u(k, in_dim, out_dim):
        bound = 1.0 / jnp.sqrt(in_dim)
        return jax.random.uniform(
            k, (in_dim, out_dim), dtype=jnp.float32, minval=-bound, maxval=bound)

    return (u(k1, n_features, 64), u(k2, 64, 64), u(k3, 64, 64), u(k4, 64, 2))


def _reference_forward(x, w1, w2, w3, w4):
    # Mimics the kernel's bf16 operand rounding (f32 accumulation) so the
    # comparison tolerance can stay tight.
    bf, f32 = jnp.bfloat16, jnp.float32
    c = lambda a: a.astype(bf).astype(f32)
    h = c(x.reshape(x.shape[0], -1))
    h = jax.nn.relu(h @ c(w1))
    h = jax.nn.relu(c(h) @ c(w2))
    h = jax.nn.relu(c(h) @ c(w3))
    return c(h) @ c(w4)


if __name__ == "__main__":
    key = jax.random.PRNGKey(0)
    kx, kp, kx2, kp2 = jax.random.split(key, 4)

    # Primary small test: B=8, n_features=32 (weights prepped once, reused).
    B, n_features = 8, 32
    x = jax.random.normal(kx, (B, n_features), dtype=jnp.float32)
    w1, w2, w3, w4 = _init_params(kp, n_features)
    params = prepare_hindroid_params(w1, w2, w3, w4)

    out = jax.block_until_ready(hindroid_substitute_apply(x, params))
    ref = _reference_forward(x, w1, w2, w3, w4)
    assert out.shape == (B, 2)
    assert jnp.allclose(out, ref, atol=2e-3, rtol=2e-3), "mismatch vs JAX reference"

    # Ragged shapes: batch not a multiple of the tile and features not a
    # multiple of the K tile (exercises partial blocks + in-kernel K mask).
    B2, nf2 = 13, 200
    x2 = jax.random.normal(kx2, (B2, nf2), dtype=jnp.float32)
    v1, v2, v3, v4 = _init_params(kp2, nf2)
    p2 = prepare_hindroid_params(v1, v2, v3, v4)

    out2 = jax.block_until_ready(hindroid_substitute_apply(x2, p2))
    ref2 = _reference_forward(x2, v1, v2, v3, v4)
    assert out2.shape == (B2, 2)
    assert jnp.allclose(out2, ref2, atol=2e-3, rtol=2e-3), "ragged-shape mismatch"

    print("KERNEL_OK")
</pallas_src>

<mosaic_0001>
module attributes {stable_mosaic.version = 11 : i64} {
  func.func @_mlp_kernel(%arg0: i32, %arg1: i32, %arg2: memref<8x128xf32, #tpu.memory_space<vmem>>, %arg3: memref<128x128xbf16, #tpu.memory_space<vmem>>, %arg4: memref<128x128xbf16, #tpu.memory_space<vmem>>, %arg5: memref<128x128xbf16, #tpu.memory_space<vmem>>, %arg6: memref<128x2xbf16, #tpu.memory_space<vmem>>, %arg7: memref<8x2xf32, #tpu.memory_space<vmem>>, %arg8: memref<8x128xf32, #tpu.memory_space<vmem>>) attributes {dimension_semantics = [#tpu.dimension_semantics<parallel>, #tpu.dimension_semantics<arbitrary>], iteration_bounds = array<i64: 1, 1>, scalar_prefetch = 0 : i64, scratch_operands = 1 : i64, tpu.core_type = #tpu.core_type<tc>, window_params = [{transform_indices = @transform_0, window_bounds = array<i64: 8, 128>}, {transform_indices = @transform_1, window_bounds = array<i64: 128, 128>}, {pipeline_mode = #tpu.pipeline_mode<synchronous>, transform_indices = @transform_2, window_bounds = array<i64: 128, 128>}, {pipeline_mode = #tpu.pipeline_mode<synchronous>, transform_indices = @transform_3, window_bounds = array<i64: 128, 128>}, {pipeline_mode = #tpu.pipeline_mode<synchronous>, transform_indices = @transform_4, window_bounds = array<i64: 128, 2>}, {transform_indices = @transform_5, window_bounds = array<i64: 8, 2>}]} {
    %c0_i32 = arith.constant 0 : i32
    %0 = arith.cmpi eq, %arg1, %c0_i32 : i32
    %1 = arith.extui %0 : i1 to i32
    %c0_i32_0 = arith.constant 0 : i32
    %2 = arith.cmpi ne, %1, %c0_i32_0 : i32
    scf.if %2 {
      %cst_11 = arith.constant 0.000000e+00 : f32
      %21 = vector.broadcast %cst_11 : f32 to vector<8x128xf32>
      %c0_12 = arith.constant 0 : index
      %c0_13 = arith.constant 0 : index
      %22 = vector.load %arg8[%c0_12, %c0_13] : memref<8x128xf32, #tpu.memory_space<vmem>>, vector<8x128xf32>
      tpu.vector_store %arg8[%c0_12, %c0_13], %21 {strides = array<i32>} : memref<8x128xf32, #tpu.memory_space<vmem>>, vector<8x128xf32>,
    } else {
    }
    %c0 = arith.constant 0 : index
    %c0_1 = arith.constant 0 : index
    %3 = vector.load %arg2[%c0, %c0_1] : memref<8x128xf32, #tpu.memory_space<vmem>>, vector<8x128xf32>
    %4 = tpu.iota {dimensions = array<i32: 1>} : vector<8x128xi32>
    %c128_i32 = arith.constant 128 : i32
    %5 = arith.muli %arg1, %c128_i32 : i32
    %6 = vector.broadcast %5 : i32 to vector<8x128xi32>
    %7 = arith.addi %4, %6 : vector<8x128xi32>
    %c32_i32 = arith.constant 32 : i32
    %8 = vector.broadcast %c32_i32 : i32 to vector<8x128xi32>
    %9 = arith.cmpi slt, %7, %8 : vector<8x128xi32>
    %cst = arith.constant 0.000000e+00 : f32
    %10 = vector.broadcast %cst : f32 to vector<8x128xf32>
    %11 = arith.select %9, %3, %10 : vector<8x128xi1>, vector<8x128xf32>
    %12 = arith.truncf %11 : vector<8x128xf32> to vector<8x128xbf16>
    %c0_2 = arith.constant 0 : index
    %c0_3 = arith.constant 0 : index
    %13 = vector.load %arg8[%c0_2, %c0_3] : memref<8x128xf32, #tpu.memory_space<vmem>>, vector<8x128xf32>
    %c0_4 = arith.constant 0 : index
    %c0_5 = arith.constant 0 : index
    %14 = vector.load %arg3[%c0_4, %c0_5] : memref<128x128xbf16, #tpu.memory_space<vmem>>, vector<128x128xbf16>
    %cst_6 = arith.constant dense<0.000000e+00> : vector<8x128xf32>
    %15 = tpu.matmul %12, %14, %cst_6 {dimension_numbers = #tpu.dot_dimension_numbers<[1], [0], [0], [1], [0, 0, 1, 1], [], []>} : vector<8x128xbf16>, vector<128x128xbf16>, vector<8x128xf32> -> vector<8x128xf32>
    %16 = arith.addf %13, %15 : vector<8x128xf32>
    %c0_7 = arith.constant 0 : index
    %c0_8 = arith.constant 0 : index
    %17 = vector.load %arg8[%c0_7, %c0_8] : memref<8x128xf32, #tpu.memory_space<vmem>>, vector<8x128xf32>
    tpu.vector_store %arg8[%c0_7, %c0_8], %16 {strides = array<i32>} : memref<8x128xf32, #tpu.memory_space<vmem>>, vector<8x128xf32>,
    %c0_i32_9 = arith.constant 0 : i32
    %18 = arith.cmpi eq, %arg1, %c0_i32_9 : i32
    %19 = arith.extui %18 : i1 to i32
    %c0_i32_10 = arith.constant 0 : i32
    %20 = arith.cmpi ne, %19, %c0_i32_10 : i32
    scf.if %20 {
      %c0_11 = arith.constant 0 : index
      %c0_12 = arith.constant 0 : index
      %21 = vector.load %arg8[%c0_11, %c0_12] : memref<8x128xf32, #tpu.memory_space<vmem>>, vector<8x128xf32>
      %cst_13 = arith.constant 0.000000e+00 : f32
      %22 = vector.broadcast %cst_13 : f32 to vector<8x128xf32>
      %23 = arith.maximumf %21, %22 : vector<8x128xf32>
      %24 = arith.truncf %23 : vector<8x128xf32> to vector<8x128xbf16>
      %c0_14 = arith.constant 0 : index
      %c0_15 = arith.constant 0 : index
      %25 = vector.load %arg4[%c0_14, %c0_15] : memref<128x128xbf16, #tpu.memory_space<vmem>>, vector<128x128xbf16>
      %cst_16 = arith.constant dense<0.000000e+00> : vector<8x128xf32>
      %26 = tpu.matmul %24, %25, %cst_16 {dimension_numbers = #tpu.dot_dimension_numbers<[1], [0], [0], [1], [0, 0, 1, 1], [], []>} : vector<8x128xbf16>, vector<128x128xbf16>, vector<8x128xf32> -> vector<8x128xf32>
      %cst_17 = arith.constant 0.000000e+00 : f32
      %27 = vector.broadcast %cst_17 : f32 to vector<8x128xf32>
      %28 = arith.maximumf %26, %27 : vector<8x128xf32>
      %29 = arith.truncf %28 : vector<8x128xf32> to vector<8x128xbf16>
      %c0_18 = arith.constant 0 : index
      %c0_19 = arith.constant 0 : index
      %30 = vector.load %arg5[%c0_18, %c0_19] : memref<128x128xbf16, #tpu.memory_space<vmem>>, vector<128x128xbf16>
      %cst_20 = arith.constant dense<0.000000e+00> : vector<8x128xf32>
      %31 = tpu.matmul %29, %30, %cst_20 {dimension_numbers = #tpu.dot_dimension_numbers<[1], [0], [0], [1], [0, 0, 1, 1], [], []>} : vector<8x128xbf16>, vector<128x128xbf16>, vector<8x128xf32> -> vector<8x128xf32>
      %cst_21 = arith.constant 0.000000e+00 : f32
      %32 = vector.broadcast %cst_21 : f32 to vector<8x128xf32>
      %33 = arith.maximumf %31, %32 : vector<8x128xf32>
      %34 = arith.truncf %33 : vector<8x128xf32> to vector<8x128xbf16>
      %c0_22 = arith.constant 0 : index
      %c0_23 = arith.constant 0 : index
      %35 = vector.load %arg6[%c0_22, %c0_23] : memref<128x2xbf16, #tpu.memory_space<vmem>>, vector<128x2xbf16>
      %cst_24 = arith.constant dense<0.000000e+00> : vector<8x2xf32>
      %36 = tpu.matmul %34, %35, %cst_24 {dimension_numbers = #tpu.dot_dimension_numbers<[1], [0], [0], [1], [0, 0, 1, 1], [], []>} : vector<8x128xbf16>, vector<128x2xbf16>, vector<8x2xf32> -> vector<8x2xf32>
      %c0_25 = arith.constant 0 : index
      %c0_26 = arith.constant 0 : index
      %37 = vector.load %arg7[%c0_25, %c0_26] : memref<8x2xf32, #tpu.memory_space<vmem>>, vector<8x2xf32>
      tpu.vector_store %arg7[%c0_25, %c0_26], %36 {strides = array<i32>} : memref<8x2xf32, #tpu.memory_space<vmem>>, vector<8x2xf32>,
    } else {
    }
    return
  }
  func.func @transform_0(%arg0: i32, %arg1: i32) -> (i32, i32) {
    %c0_i32 = arith.constant 0 : i32
    return %arg0, %arg1 : i32, i32
  }
  func.func @transform_1(%arg0: i32, %arg1: i32) -> (i32, i32) {
    %c0_i32 = arith.constant 0 : i32
    %c0_i32_0 = arith.constant 0 : i32
    return %arg1, %c0_i32 : i32, i32
  }
  func.func @transform_2(%arg0: i32, %arg1: i32) -> (i32, i32) {
    %c0_i32 = arith.constant 0 : i32
    %c0_i32_0 = arith.constant 0 : i32
    %c0_i32_1 = arith.constant 0 : i32
    return %c0_i32, %c0_i32_0 : i32, i32
  }
  func.func @transform_3(%arg0: i32, %arg1: i32) -> (i32, i32) {
    %c0_i32 = arith.constant 0 : i32
    %c0_i32_0 = arith.constant 0 : i32
    %c0_i32_1 = arith.constant 0 : i32
    return %c0_i32, %c0_i32_0 : i32, i32
  }
  func.func @transform_4(%arg0: i32, %arg1: i32) -> (i32, i32) {
    %c0_i32 = arith.constant 0 : i32
    %c0_i32_0 = arith.constant 0 : i32
    %c0_i32_1 = arith.constant 0 : i32
    return %c0_i32, %c0_i32_0 : i32, i32
  }
  func.func @transform_5(%arg0: i32, %arg1: i32) -> (i32, i32) {
    %c0_i32 = arith.constant 0 : i32
    %c0_i32_0 = arith.constant 0 : i32
    return %arg0, %c0_i32 : i32, i32
  }
}

</mosaic_0001>

<llo_original>
// kernel: tpu_custom_call.1
$region0: #{tpu_custom_call.1}
  #allocation0 [shape = 'u32[]', space=smem, size = 0x4, offset = 0x4, fixed_abs, tag = 'smem constant byte address 0x4 - core index']
  #allocation1 [shape = 'u32[144,128]{1,0:T(1,128)}', space=vmem, size = 0x12000, scoped, tag = 'internal scratch']
  #allocation2 [shape = 'f32[8,128]{1,0:T(8,128)}', space=vmem, size = 0x1000, scoped, tag = 'scratch operand']
  %s0 = inlined_call_operand.hbm [shape: f32[8,32], index: 0, kind: input, shape index: {}]
  %s1 = inlined_call_operand.vmem [shape: bf16[128,128], index: 1, kind: input, shape index: {}]
  %s2 = inlined_call_operand.hbm [shape: bf16[128,128], index: 2, kind: input, shape index: {}]
  %s3 = inlined_call_operand.hbm [shape: bf16[128,128], index: 3, kind: input, shape index: {}]
  %s4 = inlined_call_operand.vmem [shape: bf16[128,2], index: 4, kind: input, shape index: {}]
  %s5 = inlined_call_operand.vmem [shape: f32[8,2], index: 5, kind: output, shape index: {}]
  %s6 = sld [smem:[#allocation0]]
  $region50: #{tpu_custom_call.1} parent=0
    _
  %s8 = ssub.s32 1, %s6
  %s9 = scalar_select 0, %s8, %s6
  $region1: #{tpu_custom_call.1} parent=0
    #allocation3 [shape = 'u8[4096]{0}', space=vmem, size = 0x1000, scoped, tag = 'input window, operand 0, single buffered']
    #allocation4 [shape = 's32[1]{0}', space=sflag, size = 0x4, scoped, tag = 'scoped memory for tpu_custom_call.1']
    #allocation5 [shape = 'u8[32768]{0}', space=vmem, size = 0x8000, scoped, tag = 'input window, operand 2, single buffered']
    #allocation6 [shape = 's32[1]{0}', space=sflag, size = 0x4, scoped, tag = 'scoped memory for tpu_custom_call.1']
    #allocation7 [shape = 'u8[32768]{0}', space=vmem, size = 0x8000, scoped, tag = 'input window, operand 3, single buffered']
    %10 = vsyncpa [#allocation4], 0
    %11 = vsyncpa [#allocation6], 0
    // Predicated region
    $region2: #{tpu_custom_call.1} parent=1 // pred_check
      _
    $region3: #{tpu_custom_call.1} parent=1 // pred_check_branch
      %13 = sbr.rel (0) target = $region5
    $region4: #{tpu_custom_call.1} parent=1 // pred_region
      %s15 = ssub.s32 128, 128
      %16 = vsyncadd [#allocation4], %s15
      %s18 = sshll.u32 [#allocation3], 4
      %s19 = int_to_ptr.vmem [resolvable:$true] %s18
      %21 = dma.hbm_to_vmem [thread:$0]  %s0, 128, %s19, [#allocation4]
    $region5: #{tpu_custom_call.1} parent=1 // pred_fallthru
      _
    // Predicated region
    $region6: #{tpu_custom_call.1} parent=1 // pred_check
      _
    $region7: #{tpu_custom_call.1} parent=1 // pred_check_branch
      %23 = sbr.rel (0) target = $region9
    $region8: #{tpu_custom_call.1} parent=1 // pred_region
      _
    $region9: #{tpu_custom_call.1} parent=1 // pred_fallthru
      _
    // Predicated region
    $region10: #{tpu_custom_call.1} parent=1 // pred_check
      _
    $region11: #{tpu_custom_call.1} parent=1 // pred_check_branch
      %25 = sbr.rel (0) target = $region13
    $region12: #{tpu_custom_call.1} parent=1 // pred_region
      %s27 = ssub.s32 1024, 1024
      %28 = vsyncadd [#allocation6], %s27
      %s29 = sshll.u32 [#allocation5], 4
      %s30 = int_to_ptr.vmem [resolvable:$true] %s29
      %35 = dma.hbm_to_vmem [thread:$0]  %s2, 1024, %s30, [#allocation6], 64, 64, 4
    $region13: #{tpu_custom_call.1} parent=1 // pred_fallthru
      _
    // Predicated region
    $region14: #{tpu_custom_call.1} parent=1 // pred_check
      _
    $region15: #{tpu_custom_call.1} parent=1 // pred_check_branch
      %37 = sbr.rel (0) target = $region17
    $region16: #{tpu_custom_call.1} parent=1 // pred_region
      %s39 = ssub.s32 1024, 1024
      %40 = vsyncadd [#allocation6], %s39
      %s41 = sshll.u32 [#allocation7], 4
      %s42 = int_to_ptr.vmem [resolvable:$true] %s41
      %47 = dma.hbm_to_vmem [thread:$0]  %s3, 1024, %s42, [#allocation6], 64, 64, 4
    $region17: #{tpu_custom_call.1} parent=1 // pred_fallthru
      _
    // Predicated region
    $region18: #{tpu_custom_call.1} parent=1 // pred_check
      _
    $region19: #{tpu_custom_call.1} parent=1 // pred_check_branch
      %49 = sbr.rel (0) target = $region21
    $region20: #{tpu_custom_call.1} parent=1 // pred_region
      _
    $region21: #{tpu_custom_call.1} parent=1 // pred_fallthru
      _
    // Predicated region
    $region22: #{tpu_custom_call.1} parent=1 // pred_check
      _
    $region23: #{tpu_custom_call.1} parent=1 // pred_check_branch
      %51 = sbr.rel (0) target = $region25
    $region24: #{tpu_custom_call.1} parent=1 // pred_region
      %52 = dma.done [#allocation4], 128
    $region25: #{tpu_custom_call.1} parent=1 // pred_fallthru
      _
    // Predicated region
    $region26: #{tpu_custom_call.1} parent=1 // pred_check
      _
    $region27: #{tpu_custom_call.1} parent=1 // pred_check_branch
      %54 = sbr.rel (0) target = $region29
    $region28: #{tpu_custom_call.1} parent=1 // pred_region
      %55 = dma.done [#allocation6], 1024
    $region29: #{tpu_custom_call.1} parent=1 // pred_fallthru
      _
    // Predicated region
    $region30: #{tpu_custom_call.1} parent=1 // pred_check
      _
    $region31: #{tpu_custom_call.1} parent=1 // pred_check_branch
      %57 = sbr.rel (0) target = $region33
    $region32: #{tpu_custom_call.1} parent=1 // pred_region
      %58 = dma.done [#allocation6], 1024
    $region33: #{tpu_custom_call.1} parent=1 // pred_fallthru
      _
    %p60 = scmp.eq.s32.totalorder 0, 0
    // Predicated region
    $region34: #{tpu_custom_call.1} parent=1 // pred_check
      %p61 = pneg %p60
    $region35: #{tpu_custom_call.1} parent=1 // pred_check_branch
      %63 = sbr.rel (%p61) target = $region37
    $region36: #{tpu_custom_call.1} parent=1 // pred_region
      %64 = vst [vmem:[#allocation2] sm:$0xff] 0.0
    $region37: #{tpu_custom_call.1} parent=1 // pred_fallthru
      _
    %v65 = vld [vmem:[#allocation3] sm:$0xff]
    %v66 = vlaneseq
    %v67 = vand.u32 %v66, 127
    %s68 = smul.u32 0, 128
    %v69 = vstv %s68
    %v70 = vadd.s32 %v67, %v69
    %vm71 = vcmp.lt.s32.totalorder %v70, 32
    %v72 = vsel %vm71, %v65, 0.0
    %v73 = vpack.c.bf16 %v72, %v72
    %v74 = vld [vmem:[#allocation2] sm:$0xff]
    %v75 = vld [vmem:[%s1] sm:$0xf]
    %v76 = vld [vmem:[%s1 + $0x4] sm:$0xf]
    %v77 = vld [vmem:[%s1 + $0x8] sm:$0xf]
    %v78 = vld [vmem:[%s1 + $0xc] sm:$0xf]
    %v79 = vld [vmem:[%s1 + $0x10] sm:$0xf]
    %v80 = vld [vmem:[%s1 + $0x14] sm:$0xf]
    %v81 = vld [vmem:[%s1 + $0x18] sm:$0xf]
    %v82 = vld [vmem:[%s1 + $0x1c] sm:$0xf]
    %v83 = vld [vmem:[%s1 + $0x20] sm:$0xf]
    %v84 = vld [vmem:[%s1 + $0x24] sm:$0xf]
    %v85 = vld [vmem:[%s1 + $0x28] sm:$0xf]
    %v86 = vld [vmem:[%s1 + $0x2c] sm:$0xf]
    %v87 = vld [vmem:[%s1 + $0x30] sm:$0xf]
    %v88 = vld [vmem:[%s1 + $0x34] sm:$0xf]
    %v89 = vld [vmem:[%s1 + $0x38] sm:$0xf]
    %v90 = vld [vmem:[%s1 + $0x3c] sm:$0xf]
    %v107 = vunpack.c.l.b16 %v75
    %v108 = vunpack.c.l.b16 %v76
    %v109 = vunpack.c.l.b16 %v77
    %v110 = vunpack.c.l.b16 %v78
    %v111 = vunpack.c.l.b16 %v79
    %v112 = vunpack.c.l.b16 %v80
    %v113 = vunpack.c.l.b16 %v81
    %v114 = vunpack.c.l.b16 %v82
    %v115 = vunpack.c.l.b16 %v83
    %v116 = vunpack.c.l.b16 %v84
    %v117 = vunpack.c.l.b16 %v85
    %v118 = vunpack.c.l.b16 %v86
    %v119 = vunpack.c.l.b16 %v87
    %v120 = vunpack.c.l.b16 %v88
    %v121 = vunpack.c.l.b16 %v89
    %v122 = vunpack.c.l.b16 %v90
    %v123 = vpack.c.b16 %v108, %v107
    %v124 = vpack.c.b16 %v110, %v109
    %v125 = vpack.c.b16 %v112, %v111
    %v126 = vpack.c.b16 %v114, %v113
    %v127 = vpack.c.b16 %v116, %v115
    %v128 = vpack.c.b16 %v118, %v117
    %v129 = vpack.c.b16 %v120, %v119
    %v130 = vpack.c.b16 %v122, %v121
    %139 = vmatprep.subr.bf16.mxu0 0
    %140 = vmatpush1.bf16.msra.mxu0 %v123
    %141 = vmatprep.subr.bf16.mxu0 0
    %142 = vmatpush1.bf16.msra.mxu0 %v124
    %143 = vmatprep.subr.bf16.mxu0 0
    %144 = vmatpush1.bf16.msra.mxu0 %v125
    %145 = vmatprep.subr.bf16.mxu0 0
    %146 = vmatpush1.bf16.msra.mxu0 %v126
    %147 = vmatprep.subr.bf16.mxu0 0
    %148 = vmatpush1.bf16.msra.mxu0 %v127
    %149 = vmatprep.subr.bf16.mxu0 0
    %150 = vmatpush1.bf16.msra.mxu0 %v128
    %151 = vmatprep.subr.bf16.mxu0 0
    %152 = vmatpush1.bf16.msra.mxu0 %v129
    %153 = vmatprep.subr.bf16.mxu0 0
    %154 = vmatpush1.bf16.msra.mxu0 %v130
    %155 = vmatprep.subr.bf16.mxu0 0
    %156 = vmatpush1.bf16.msra.mxu0 0
    %157 = vmatprep.subr.bf16.mxu0 0
    %158 = vmatpush1.bf16.msra.mxu0 0
    %159 = vmatprep.subr.bf16.mxu0 0
    %160 = vmatpush1.bf16.msra.mxu0 0
    %161 = vmatprep.subr.bf16.mxu0 0
    %162 = vmatpush1.bf16.msra.mxu0 0
    %163 = vmatprep.subr.bf16.mxu0 0
    %164 = vmatpush1.bf16.msra.mxu0 0
    %165 = vmatprep.subr.bf16.mxu0 0
    %166 = vmatpush1.bf16.msra.mxu0 0
    %167 = vmatprep.subr.bf16.mxu0 0
    %168 = vmatpush1.bf16.msra.mxu0 0
    %169 = vmatprep.subr.bf16.mxu0 0
    %170 = vmatpush1.bf16.msra.mxu0 0
    %171 = vmatprep.mubr.bf16.mxu0 0
    %172 = vmatmul.mubr.bf16.gmra.mrb[0].mxu0 %v73
    %v173 = vpop.f32.mrb[0].mxu0
    %v174 = vadd.f32 0.0, %v173
    %v175 = vpop.f32.mrb[0].mxu0
    %v176 = vpop.f32.mrb[0].mxu0
    %v177 = vpop.f32.mrb[0].mxu0
    %178 = vdwg.mxu0
    %v179 = vadd.f32 %v74, %v174
    %180 = vst [vmem:[#allocation2] sm:$0xff] %v179
    // Predicated region
    $region38: #{tpu_custom_call.1} parent=1 // pred_check
      %p181 = pneg %p60
    $region39: #{tpu_custom_call.1} parent=1 // pred_check_branch
      %183 = sbr.rel (%p181) target = $region41
    $region40: #{tpu_custom_call.1} parent=1 // pred_region
      %v184 = vld [vmem:[#allocation2] sm:$0xff]
      %v185 = vmax.f32 %v184, 0.0
      %v186 = vpack.c.bf16 %v185, %v185
      %v187 = vld [vmem:[#allocation5] sm:$0xf]
      %v188 = vld [vmem:[#allocation5 + $0x4] sm:$0xf]
      %v189 = vld [vmem:[#allocation5 + $0x8] sm:$0xf]
      %v190 = vld [vmem:[#allocation5 + $0xc] sm:$0xf]
      %v191 = vld [vmem:[#allocation5 + $0x10] sm:$0xf]
      %v192 = vld [vmem:[#allocation5 + $0x14] sm:$0xf]
      %v193 = vld [vmem:[#allocation5 + $0x18] sm:$0xf]
      %v194 = vld [vmem:[#allocation5 + $0x1c] sm:$0xf]
      %v195 = vld [vmem:[#allocation5 + $0x20] sm:$0xf]
      %v196 = vld [vmem:[#allocation5 + $0x24] sm:$0xf]
      %v197 = vld [vmem:[#allocation5 + $0x28] sm:$0xf]
      %v198 = vld [vmem:[#allocation5 + $0x2c] sm:$0xf]
      %v199 = vld [vmem:[#allocation5 + $0x30] sm:$0xf]
      %v200 = vld [vmem:[#allocation5 + $0x34] sm:$0xf]
      %v201 = vld [vmem:[#allocation5 + $0x38] sm:$0xf]
      %v202 = vld [vmem:[#allocation5 + $0x3c] sm:$0xf]
      %v219 = vunpack.c.l.b16 %v187
      %v220 = vunpack.c.l.b16 %v188
      %v221 = vunpack.c.l.b16 %v189
      %v222 = vunpack.c.l.b16 %v190
      %v223 = vunpack.c.l.b16 %v191
      %v224 = vunpack.c.l.b16 %v192
      %v225 = vunpack.c.l.b16 %v193
      %v226 = vunpack.c.l.b16 %v194
      %v227 = vunpack.c.l.b16 %v195
      %v228 = vunpack.c.l.b16 %v196
      %v229 = vunpack.c.l.b16 %v197
      %v230 = vunpack.c.l.b16 %v198
      %v231 = vunpack.c.l.b16 %v199
      %v232 = vunpack.c.l.b16 %v200
      %v233 = vunpack.c.l.b16 %v201
      %v234 = vunpack.c.l.b16 %v202
      %v235 = vpack.c.b16 %v220, %v219
      %v236 = vpack.c.b16 %v222, %v221
      %v237 = vpack.c.b16 %v224, %v223
      %v238 = vpack.c.b16 %v226, %v225
      %v239 = vpack.c.b16 %v228, %v227
      %v240 = vpack.c.b16 %v230, %v229
      %v241 = vpack.c.b16 %v232, %v231
      %v242 = vpack.c.b16 %v234, %v233
      %251 = vmatprep.subr.bf16.mxu0 0
      %252 = vmatpush1.bf16.msra.mxu0 %v235
      %253 = vmatprep.subr.bf16.mxu0 0
      %254 = vmatpush1.bf16.msra.mxu0 %v236
      %255 = vmatprep.subr.bf16.mxu0 0
      %256 = vmatpush1.bf16.msra.mxu0 %v237
      %257 = vmatprep.subr.bf16.mxu0 0
      %258 = vmatpush1.bf16.msra.mxu0 %v238
      %259 = vmatprep.subr.bf16.mxu0 0
      %260 = vmatpush1.bf16.msra.mxu0 %v239
      %261 = vmatprep.subr.bf16.mxu0 0
      %262 = vmatpush1.bf16.msra.mxu0 %v240
      %263 = vmatprep.subr.bf16.mxu0 0
      %264 = vmatpush1.bf16.msra.mxu0 %v241
      %265 = vmatprep.subr.bf16.mxu0 0
      %266 = vmatpush1.bf16.msra.mxu0 %v242
      %267 = vmatprep.subr.bf16.mxu0 0
      %268 = vmatpush1.bf16.msra.mxu0 0
      %269 = vmatprep.subr.bf16.mxu0 0
      %270 = vmatpush1.bf16.msra.mxu0 0
      %271 = vmatprep.subr.bf16.mxu0 0
      %272 = vmatpush1.bf16.msra.mxu0 0
      %273 = vmatprep.subr.bf16.mxu0 0
      %274 = vmatpush1.bf16.msra.mxu0 0
      %275 = vmatprep.subr.bf16.mxu0 0
      %276 = vmatpush1.bf16.msra.mxu0 0
      %277 = vmatprep.subr.bf16.mxu0 0
      %278 = vmatpush1.bf16.msra.mxu0 0
      %279 = vmatprep.subr.bf16.mxu0 0
      %280 = vmatpush1.bf16.msra.mxu0 0
      %281 = vmatprep.subr.bf16.mxu0 0
      %282 = vmatpush1.bf16.msra.mxu0 0
      %283 = vmatprep.mubr.bf16.mxu0 0
      %284 = vmatmul.mubr.bf16.gmra.mrb[0].mxu0 %v186
      %v285 = vpop.f32.mrb[0].mxu0
      %v286 = vadd.f32 0.0, %v285
      %v287 = vpop.f32.mrb[0].mxu0
      %v288 = vpop.f32.mrb[0].mxu0
      %v289 = vpop.f32.mrb[0].mxu0
      %290 = vdwg.mxu0
      %v291 = vmax.f32 %v286, 0.0
      %v292 = vpack.c.bf16 %v291, %v291
      %v293 = vld [vmem:[#allocation7] sm:$0xf]
      %v294 = vld [vmem:[#allocation7 + $0x4] sm:$0xf]
      %v295 = vld [vmem:[#allocation7 + $0x8] sm:$0xf]
      %v296 = vld [vmem:[#allocation7 + $0xc] sm:$0xf]
      %v297 = vld [vmem:[#allocation7 + $0x10] sm:$0xf]
      %v298 = vld [vmem:[#allocation7 + $0x14] sm:$0xf]
      %v299 = vld [vmem:[#allocation7 + $0x18] sm:$0xf]
      %v300 = vld [vmem:[#allocation7 + $0x1c] sm:$0xf]
      %v301 = vld [vmem:[#allocation7 + $0x20] sm:$0xf]
      %v302 = vld [vmem:[#allocation7 + $0x24] sm:$0xf]
      %v303 = vld [vmem:[#allocation7 + $0x28] sm:$0xf]
      %v304 = vld [vmem:[#allocation7 + $0x2c] sm:$0xf]
      %v305 = vld [vmem:[#allocation7 + $0x30] sm:$0xf]
      %v306 = vld [vmem:[#allocation7 + $0x34] sm:$0xf]
      %v307 = vld [vmem:[#allocation7 + $0x38] sm:$0xf]
      %v308 = vld [vmem:[#allocation7 + $0x3c] sm:$0xf]
      %v325 = vunpack.c.l.b16 %v293
      %v326 = vunpack.c.l.b16 %v294
      %v327 = vunpack.c.l.b16 %v295
      %v328 = vunpack.c.l.b16 %v296
      %v329 = vunpack.c.l.b16 %v297
      %v330 = vunpack.c.l.b16 %v298
      %v331 = vunpack.c.l.b16 %v299
      %v332 = vunpack.c.l.b16 %v300
      %v333 = vunpack.c.l.b16 %v301
      %v334 = vunpack.c.l.b16 %v302
      %v335 = vunpack.c.l.b16 %v303
      %v336 = vunpack.c.l.b16 %v304
      %v337 = vunpack.c.l.b16 %v305
      %v338 = vunpack.c.l.b16 %v306
      %v339 = vunpack.c.l.b16 %v307
      %v340 = vunpack.c.l.b16 %v308
      %v341 = vpack.c.b16 %v326, %v325
      %v342 = vpack.c.b16 %v328, %v327
      %v343 = vpack.c.b16 %v330, %v329
      %v344 = vpack.c.b16 %v332, %v331
      %v345 = vpack.c.b16 %v334, %v333
      %v346 = vpack.c.b16 %v336, %v335
      %v347 = vpack.c.b16 %v338, %v337
      %v348 = vpack.c.b16 %v340, %v339
      %357 = vmatprep.subr.bf16.mxu0 0
      %358 = vmatpush1.bf16.msra.mxu0 %v341
      %359 = vmatprep.subr.bf16.mxu0 0
      %360 = vmatpush1.bf16.msra.mxu0 %v342
      %361 = vmatprep.subr.bf16.mxu0 0
      %362 = vmatpush1.bf16.msra.mxu0 %v343
      %363 = vmatprep.subr.bf16.mxu0 0
      %364 = vmatpush1.bf16.msra.mxu0 %v344
      %365 = vmatprep.subr.bf16.mxu0 0
      %366 = vmatpush1.bf16.msra.mxu0 %v345
      %367 = vmatprep.subr.bf16.mxu0 0
      %368 = vmatpush1.bf16.msra.mxu0 %v346
      %369 = vmatprep.subr.bf16.mxu0 0
      %370 = vmatpush1.bf16.msra.mxu0 %v347
      %371 = vmatprep.subr.bf16.mxu0 0
      %372 = vmatpush1.bf16.msra.mxu0 %v348
      %373 = vmatprep.subr.bf16.mxu0 0
      %374 = vmatpush1.bf16.msra.mxu0 0
      %375 = vmatprep.subr.bf16.mxu0 0
      %376 = vmatpush1.bf16.msra.mxu0 0
      %377 = vmatprep.subr.bf16.mxu0 0
      %378 = vmatpush1.bf16.msra.mxu0 0
      %379 = vmatprep.subr.bf16.mxu0 0
      %380 = vmatpush1.bf16.msra.mxu0 0
      %381 = vmatprep.subr.bf16.mxu0 0
      %382 = vmatpush1.bf16.msra.mxu0 0
      %383 = vmatprep.subr.bf16.mxu0 0
      %384 = vmatpush1.bf16.msra.mxu0 0
      %385 = vmatprep.subr.bf16.mxu0 0
      %386 = vmatpush1.bf16.msra.mxu0 0
      %387 = vmatprep.subr.bf16.mxu0 0
      %388 = vmatpush1.bf16.msra.mxu0 0
      %389 = vmatprep.mubr.bf16.mxu0 0
      %390 = vmatmul.mubr.bf16.gmra.mrb[0].mxu0 %v292
      %v391 = vpop.f32.mrb[0].mxu0
      %v392 = vadd.f32 0.0, %v391
      %v393 = vpop.f32.mrb[0].mxu0
      %v394 = vpop.f32.mrb[0].mxu0
      %v395 = vpop.f32.mrb[0].mxu0
      %396 = vdwg.mxu0
      %v397 = vmax.f32 %v392, 0.0
      %v398 = vpack.c.bf16 %v397, %v397
      %v399 = vld [vmem:[%s4] sm:$0xf]
      %v400 = vld [vmem:[%s4 + $0x4] sm:$0xf]
      %v401 = vld [vmem:[%s4 + $0x8] sm:$0xf]
      %v402 = vld [vmem:[%s4 + $0xc] sm:$0xf]
      %v403 = vld [vmem:[%s4 + $0x10] sm:$0xf]
      %v404 = vld [vmem:[%s4 + $0x14] sm:$0xf]
      %v405 = vld [vmem:[%s4 + $0x18] sm:$0xf]
      %v406 = vld [vmem:[%s4 + $0x1c] sm:$0xf]
      %v407 = vld [vmem:[%s4 + $0x20] sm:$0xf]
      %v408 = vld [vmem:[%s4 + $0x24] sm:$0xf]
      %v409 = vld [vmem:[%s4 + $0x28] sm:$0xf]
      %v410 = vld [vmem:[%s4 + $0x2c] sm:$0xf]
      %v411 = vld [vmem:[%s4 + $0x30] sm:$0xf]
      %v412 = vld [vmem:[%s4 + $0x34] sm:$0xf]
      %v413 = vld [vmem:[%s4 + $0x38] sm:$0xf]
      %v414 = vld [vmem:[%s4 + $0x3c] sm:$0xf]
      %v431 = vunpack.c.l.b16 %v399
      %v432 = vunpack.c.l.b16 %v400
      %v433 = vunpack.c.l.b16 %v401
      %v434 = vunpack.c.l.b16 %v402
      %v435 = vunpack.c.l.b16 %v403
      %v436 = vunpack.c.l.b16 %v404
      %v437 = vunpack.c.l.b16 %v405
      %v438 = vunpack.c.l.b16 %v406
      %v439 = vunpack.c.l.b16 %v407
      %v440 = vunpack.c.l.b16 %v408
      %v441 = vunpack.c.l.b16 %v409
      %v442 = vunpack.c.l.b16 %v410
      %v443 = vunpack.c.l.b16 %v411
      %v444 = vunpack.c.l.b16 %v412
      %v445 = vunpack.c.l.b16 %v413
      %v446 = vunpack.c.l.b16 %v414
      %v447 = vpack.c.b16 %v432, %v431
      %v448 = vpack.c.b16 %v434, %v433
      %v449 = vpack.c.b16 %v436, %v435
      %v450 = vpack.c.b16 %v438, %v437
      %v451 = vpack.c.b16 %v440, %v439
      %v452 = vpack.c.b16 %v442, %v441
      %v453 = vpack.c.b16 %v444, %v443
      %v454 = vpack.c.b16 %v446, %v445
      %463 = vmatprep.subr.bf16.mxu0 0
      %464 = vmatpush1.bf16.msra.mxu0 %v447
      %465 = vmatprep.subr.bf16.mxu0 0
      %466 = vmatpush1.bf16.msra.mxu0 %v448
      %467 = vmatprep.subr.bf16.mxu0 0
      %468 = vmatpush1.bf16.msra.mxu0 %v449
      %469 = vmatprep.subr.bf16.mxu0 0
      %470 = vmatpush1.bf16.msra.mxu0 %v450
      %471 = vmatprep.subr.bf16.mxu0 0
      %472 = vmatpush1.bf16.msra.mxu0 %v451
      %473 = vmatprep.subr.bf16.mxu0 0
      %474 = vmatpush1.bf16.msra.mxu0 %v452
      %475 = vmatprep.subr.bf16.mxu0 0
      %476 = vmatpush1.bf16.msra.mxu0 %v453
      %477 = vmatprep.subr.bf16.mxu0 0
      %478 = vmatpush1.bf16.msra.mxu0 %v454
      %479 = vmatprep.subr.bf16.mxu0 0
      %480 = vmatpush1.bf16.msra.mxu0 0
      %481 = vmatprep.subr.bf16.mxu0 0
      %482 = vmatpush1.bf16.msra.mxu0 0
      %483 = vmatprep.subr.bf16.mxu0 0
      %484 = vmatpush1.bf16.msra.mxu0 0
      %485 = vmatprep.subr.bf16.mxu0 0
      %486 = vmatpush1.bf16.msra.mxu0 0
      %487 = vmatprep.subr.bf16.mxu0 0
      %488 = vmatpush1.bf16.msra.mxu0 0
      %489 = vmatprep.subr.bf16.mxu0 0
      %490 = vmatpush1.bf16.msra.mxu0 0
      %491 = vmatprep.subr.bf16.mxu0 0
      %492 = vmatpush1.bf16.msra.mxu0 0
      %493 = vmatprep.subr.bf16.mxu0 0
      %494 = vmatpush1.bf16.msra.mxu0 0
      %495 = vmatprep.mubr.bf16.mxu0 0
      %496 = vmatmul.mubr.bf16.gmra.mrb[0].mxu0 %v398
      %v497 = vpop.f32.mrb[0].mxu0
      %v498 = vadd.f32 0.0, %v497
      %v499 = vpop.f32.mrb[0].mxu0
      %v500 = vpop.f32.mrb[0].mxu0
      %v501 = vpop.f32.mrb[0].mxu0
      %502 = vdwg.mxu0
      %vm503 = vcmask 15360
      %504 = vst.msk [vmem:[%s5] sm:$0xff] %vm503, %v498
    $region41: #{tpu_custom_call.1} parent=1 // pred_fallthru
      _
    // Predicated region
    $region42: #{tpu_custom_call.1} parent=1 // pred_check
      _
    $region43: #{tpu_custom_call.1} parent=1 // pred_check_branch
      %506 = sbr.rel (0) target = $region45
    $region44: #{tpu_custom_call.1} parent=1 // pred_region
      _
    $region45: #{tpu_custom_call.1} parent=1 // pred_fallthru
      _
    // Predicated region
    $region46: #{tpu_custom_call.1} parent=1 // pred_check
      _
    $region47: #{tpu_custom_call.1} parent=1 // pred_check_branch
      %508 = sbr.rel (0) target = $region49
    $region48: #{tpu_custom_call.1} parent=1 // pred_region
      _
    $region49: #{tpu_custom_call.1} parent=1 // pred_fallthru
      _
    %509 = vsyncpa [#allocation4], 1
    %510 = vsyncpa [#allocation6], 1

</llo_original>
